<compile_context>
chip_gen: v7x
topology: tpu7x:2x2x1
jax: 0.10.0
libtpu: 0.0.40
codegen_flags: <defaults>
</compile_context>

<pallas_src>
import functools

import jax
import jax.numpy as jnp
from jax.experimental import pallas as pl
from jax.experimental.pallas import tpu as pltpu

_LANE = 128
_SUBLANE = 8
_MASK_NEG = -1e30  # finite "-inf": exp(_MASK_NEG - m) underflows to exactly 0


def _round_up(x, m):
    return (x + m - 1) // m * m


def _tag_intent_kernel(x_ref, wt_ref, b_ref, o_ref):
    # x_ref: (TB, D) f32, wt_ref: (D, Np) bf16, b_ref: (1, Np) f32,
    # o_ref: (TB, N) f32 with N = num_intent_labels (full last dim of output).
    x = x_ref[...]
    wt = wt_ref[...].astype(jnp.float32)            # up-cast once per tile (VPU)
    logits = jnp.dot(x, wt, preferred_element_type=jnp.float32) + b_ref[...]
    # Padded label lanes carry bias = -1e30 (set in prepare_params) and zero
    # weight columns, so they drop out of max/sum below -- no in-kernel masking.
    m = jnp.max(logits, axis=-1, keepdims=True)
    e = jnp.exp(logits - m)
    denom = jnp.sum(e, axis=-1, keepdims=True)
    probs = e / denom                               # exact normalization
    n = o_ref.shape[-1]
    o_ref[...] = probs[:, :n].astype(o_ref.dtype)


def prepare_params(weight, bias, *, weight_dtype=jnp.bfloat16):
    """One-time (model-load) prep. weight: (N, D) nn.Linear layout, bias: (N,).
    Returns wt_pad (D, Np) in bf16 (label axis lane-padded to a multiple of 128,
    padded columns zero) and b_pad (1, Np) f32 with padded lanes = -1e30 so they
    vanish from the softmax inside the kernel."""
    N, D = weight.shape
    n_pad = _round_up(max(N, _LANE), _LANE)
    wt_pad = jnp.zeros((D, n_pad), weight_dtype).at[:, :N].set(
        weight.T.astype(weight_dtype))
    b_pad = jnp.full((1, n_pad), _MASK_NEG, jnp.float32).at[:, :N].set(
        bias.astype(jnp.float32))
    return wt_pad, b_pad


def _generation_caps():
    """(tb_cap, vmem_budget_bytes, vmem_limit_bytes) per TPU generation.
    v5e/v6e (128 MiB VMEM) -> large tiles; v7x / unknown -> conservative."""
    try:
        vmem_bytes = int(getattr(pltpu.get_tpu_info(), "vmem_capacity_bytes", 0))
    except Exception:
        vmem_bytes = 0
    if vmem_bytes >= (100 << 20):        # v5e / v6e
        return 1024, 48 << 20, 64 << 20
    return 512, 20 << 20, 32 << 20        # v7x (64 MiB) or unknown


def _choose_tb(B, D, n_pad, n_out, *, tb_cap, vmem_budget):
    tb = min(tb_cap, _round_up(B, _SUBLANE))
    # Prefer >= 2 grid steps so the "parallel" batch axis can land on both
    # TensorCores on v7x (per-step cost ~0.35 us, negligible elsewhere).
    if B > _SUBLANE:
        tb = min(tb, _round_up(pl.cdiv(B, 2), _SUBLANE))
    tb = max(tb, _SUBLANE)
    while tb > _SUBLANE:
        need = (2 * tb * D * 4            # x tiles, double-buffered, f32
                + 2 * tb * n_out * 4      # out tiles, double-buffered, f32
                + 2 * D * n_pad * 2       # resident weight, double-buffered, bf16
                + 2 * n_pad * 4)          # bias, double-buffered, f32
        if need <= vmem_budget:
            break
        tb = max(_SUBLANE, _round_up(tb // 2, _SUBLANE))
    return tb


@functools.partial(jax.jit, static_argnames=("num_labels",))
def tag_intent_classifier(x, wt_pad, b_pad, *, num_labels):
    """Hot path: softmax(x @ W.T + b, axis=1). x: (B, D) f32. Returns (B, N) f32."""
    B, D = x.shape
    n_pad = wt_pad.shape[1]

    tb_cap, vmem_budget, vmem_limit = _generation_caps()
    tb = _choose_tb(B, D, n_pad, num_labels, tb_cap=tb_cap, vmem_budget=vmem_budget)
    grid = (pl.cdiv(B, tb),)   # ragged last block masked by Pallas: no pad / no slice

    return pl.pallas_call(
        _tag_intent_kernel,
        out_shape=jax.ShapeDtypeStruct((B, num_labels), jnp.float32),
        grid=grid,
        in_specs=[
            pl.BlockSpec((tb, D), lambda i: (i, 0)),      # pipelined x tiles
            pl.BlockSpec((D, n_pad), lambda i: (0, 0)),   # VMEM-resident weight (bf16)
            pl.BlockSpec((1, n_pad), lambda i: (0, 0)),   # VMEM-resident bias
        ],
        out_specs=pl.BlockSpec((tb, num_labels), lambda i: (i, 0)),  # full-N store
        compiler_params=pltpu.CompilerParams(
            dimension_semantics=("parallel",),            # megacore on v7x
            vmem_limit_bytes=vmem_limit,
        ),
        cost_estimate=pl.CostEstimate(
            flops=2 * B * D * n_pad,
            transcendentals=B * n_pad,
            bytes_accessed=4 * B * D + 2 * D * n_pad + 4 * n_pad + 4 * B * num_labels,
        ),
    )(x, wt_pad, b_pad)


if __name__ == "__main__":
    # Small shapes consistent with the module's forward (2-D input to Linear).
    B, D, N = 8, 32, 16  # batch, input_dim, num_intent_labels

    key = jax.random.PRNGKey(0)
    kx, kw, kb = jax.random.split(key, 3)

    # Deterministic init mimicking nn.Linear default: U(-1/sqrt(D), 1/sqrt(D)).
    bound = 1.0 / (D ** 0.5)
    x = jax.random.normal(kx, (B, D), dtype=jnp.float32)
    weight = jax.random.uniform(kw, (N, D), minval=-bound, maxval=bound,
                                dtype=jnp.float32)
    bias = jax.random.uniform(kb, (N,), minval=-bound, maxval=bound,
                              dtype=jnp.float32)

    # One-time parameter prep (transpose + lane-pad + bf16 weight, -1e30 bias pad).
    wt_pad, b_pad = prepare_params(weight, bias)

    # Dropout(p=0.0) is the identity; no RNG needed.
    # TODO(synk): training-mode dropout (p > 0) would need pltpu.prng_* masking.
    out = jax.block_until_ready(tag_intent_classifier(x, wt_pad, b_pad, num_labels=N))
    assert out.shape == (B, N)

    # Kernel-exactness check against the same (bf16-rounded) weights it consumed.
    w_used = wt_pad[:, :N].astype(jnp.float32)            # (D, N)
    ref = jax.nn.softmax(x @ w_used + bias, axis=1)
    assert jnp.allclose(out, ref, atol=1e-3, rtol=1e-3), "mismatch vs reference"
    assert jnp.allclose(jnp.sum(out, axis=1), 1.0, atol=1e-4), "rows not normalized"

    # Loose sanity check vs the full-f32 weights (only bf16 weight-storage error).
    ref_f32 = jax.nn.softmax(x @ weight.T + bias, axis=1)
    assert jnp.max(jnp.abs(out - ref_f32)) < 1e-2, "bf16 weight error too large"

    print("KERNEL_OK")
</pallas_src>

<mosaic_0001>
module attributes {stable_mosaic.version = 11 : i64} {
  func.func @_tag_intent_kernel(%arg0: i32, %arg1: memref<8x32xf32, #tpu.memory_space<vmem>>, %arg2: memref<32x128xbf16, #tpu.memory_space<vmem>>, %arg3: memref<1x128xf32, #tpu.memory_space<vmem>>, %arg4: memref<8x16xf32, #tpu.memory_space<vmem>>) attributes {dimension_semantics = [#tpu.dimension_semantics<parallel>], iteration_bounds = array<i64: 1>, scalar_prefetch = 0 : i64, scratch_operands = 0 : i64, tpu.core_type = #tpu.core_type<tc>, window_params = [{transform_indices = @transform_0, window_bounds = array<i64: 8, 32>}, {pipeline_mode = #tpu.pipeline_mode<synchronous>, transform_indices = @transform_1, window_bounds = array<i64: 32, 128>}, {pipeline_mode = #tpu.pipeline_mode<synchronous>, transform_indices = @transform_2, window_bounds = array<i64: 1, 128>}, {transform_indices = @transform_3, window_bounds = array<i64: 8, 16>}]} {
    %c0 = arith.constant 0 : index
    %c0_0 = arith.constant 0 : index
    %0 = vector.load %arg1[%c0, %c0_0] : memref<8x32xf32, #tpu.memory_space<vmem>>, vector<8x32xf32>
    %c0_1 = arith.constant 0 : index
    %c0_2 = arith.constant 0 : index
    %1 = vector.load %arg2[%c0_1, %c0_2] : memref<32x128xbf16, #tpu.memory_space<vmem>>, vector<32x128xbf16>
    %2 = arith.extf %1 : vector<32x128xbf16> to vector<32x128xf32>
    %cst = arith.constant dense<0.000000e+00> : vector<8x128xf32>
    %3 = tpu.matmul %0, %2, %cst {dimension_numbers = #tpu.dot_dimension_numbers<[1], [0], [0], [1], [0, 0, 1, 1], [], []>} : vector<8x32xf32>, vector<32x128xf32>, vector<8x128xf32> -> vector<8x128xf32>
    %c0_3 = arith.constant 0 : index
    %c0_4 = arith.constant 0 : index
    %4 = vector.load %arg3[%c0_3, %c0_4] : memref<1x128xf32, #tpu.memory_space<vmem>>, vector<1x128xf32>
    %5 = vector.broadcast %4 : vector<1x128xf32> to vector<8x128xf32>
    %6 = arith.addf %3, %5 : vector<8x128xf32>
    %cst_5 = arith.constant dense<0xFF800000> : vector<8xf32>
    %7 = vector.multi_reduction <maximumf>, %6, %cst_5 [1] : vector<8x128xf32> to vector<8xf32>
    %8 = vector.shape_cast %7 : vector<8xf32> to vector<8x1xf32>
    %9 = vector.broadcast %8 : vector<8x1xf32> to vector<8x128xf32>
    %10 = arith.subf %6, %9 : vector<8x128xf32>
    %11 = math.exp %10 : vector<8x128xf32>
    %cst_6 = arith.constant dense<0.000000e+00> : vector<8xf32>
    %12 = vector.multi_reduction <add>, %11, %cst_6 [1] : vector<8x128xf32> to vector<8xf32>
    %13 = vector.shape_cast %12 : vector<8xf32> to vector<8x1xf32>
    %14 = vector.broadcast %13 : vector<8x1xf32> to vector<8x128xf32>
    %15 = arith.divf %11, %14 : vector<8x128xf32>
    %16 = vector.extract_strided_slice %15 {offsets = [0, 0], sizes = [8, 16], strides = [1, 1]} : vector<8x128xf32> to vector<8x16xf32>
    %c0_7 = arith.constant 0 : index
    %c0_8 = arith.constant 0 : index
    %17 = vector.load %arg4[%c0_7, %c0_8] : memref<8x16xf32, #tpu.memory_space<vmem>>, vector<8x16xf32>
    tpu.vector_store %arg4[%c0_7, %c0_8], %16 {strides = array<i32>} : memref<8x16xf32, #tpu.memory_space<vmem>>, vector<8x16xf32>,
    return
  }
  func.func @transform_0(%arg0: i32) -> (i32, i32) {
    %c0_i32 = arith.constant 0 : i32
    %c0_i32_0 = arith.constant 0 : i32
    return %arg0, %c0_i32 : i32, i32
  }
  func.func @transform_1(%arg0: i32) -> (i32, i32) {
    %c0_i32 = arith.constant 0 : i32
    %c0_i32_0 = arith.constant 0 : i32
    %c0_i32_1 = arith.constant 0 : i32
    return %c0_i32, %c0_i32_0 : i32, i32
  }
  func.func @transform_2(%arg0: i32) -> (i32, i32) {
    %c0_i32 = arith.constant 0 : i32
    %c0_i32_0 = arith.constant 0 : i32
    %c0_i32_1 = arith.constant 0 : i32
    return %c0_i32, %c0_i32_0 : i32, i32
  }
  func.func @transform_3(%arg0: i32) -> (i32, i32) {
    %c0_i32 = arith.constant 0 : i32
    %c0_i32_0 = arith.constant 0 : i32
    return %arg0, %c0_i32 : i32, i32
  }
}

</mosaic_0001>

<llo_original>
// kernel: tag_intent_classifier.1
$region0: #{tag_intent_classifier.1}
  #allocation0 [shape = 'u32[]', space=smem, size = 0x4, offset = 0x4, fixed_abs, tag = 'smem constant byte address 0x4 - core index']
  #allocation1 [shape = 'u32[144,128]{1,0:T(1,128)}', space=vmem, size = 0x12000, scoped, tag = 'internal scratch']
  %s0 = inlined_call_operand.hbm [shape: f32[8,32], index: 0, kind: input, shape index: {}]
  %s1 = inlined_call_operand.hbm [shape: bf16[32,128], index: 1, kind: input, shape index: {}]
  %s2 = inlined_call_operand.vmem [shape: f32[1,128], index: 2, kind: input, shape index: {}]
  %s3 = inlined_call_operand.hbm [shape: f32[8,16], index: 3, kind: output, shape index: {}]
  %s4 = sld [smem:[#allocation0]]
  $region30: #{tag_intent_classifier.1} parent=0
    _
  %s6 = ssub.s32 1, %s4
  %s7 = scalar_select 0, %s6, %s4
  $region1: #{tag_intent_classifier.1} parent=0
    #allocation2 [shape = 'u8[4096]{0}', space=vmem, size = 0x1000, scoped, tag = 'input window, operand 0, single buffered']
    #allocation3 [shape = 's32[1]{0}', space=sflag, size = 0x4, scoped, tag = 'scoped memory for tag_intent_classifier.1']
    #allocation4 [shape = 's32[1]{0}', space=sflag, size = 0x4, scoped, tag = 'scoped memory for tag_intent_classifier.1']
    #allocation5 [shape = 'u8[8192]{0}', space=vmem, size = 0x2000, scoped, tag = 'input window, operand 1, single buffered']
    #allocation6 [shape = 's32[1]{0}', space=sflag, size = 0x4, scoped, tag = 'scoped memory for tag_intent_classifier.1']
    #allocation7 [shape = 'u8[4096]{0}', space=vmem, size = 0x1000, scoped, tag = 'output window, operand 0, single buffered']
    %8 = vsyncpa [#allocation3], 0
    %9 = vsyncpa [#allocation6], 0
    %10 = vsyncpa [#allocation4], 0
    // Predicated region
    $region2: #{tag_intent_classifier.1} parent=1 // pred_check
      _
    $region3: #{tag_intent_classifier.1} parent=1 // pred_check_branch
      %12 = sbr.rel (0) target = $region5
    $region4: #{tag_intent_classifier.1} parent=1 // pred_region
      %s14 = ssub.s32 128, 128
      %15 = vsyncadd [#allocation3], %s14
      %s17 = sshll.u32 [#allocation2], 4
      %s18 = int_to_ptr.vmem [resolvable:$true] %s17
      %20 = dma.hbm_to_vmem [thread:$0]  %s0, 128, %s18, [#allocation3]
    $region5: #{tag_intent_classifier.1} parent=1 // pred_fallthru
      _
    // Predicated region
    $region6: #{tag_intent_classifier.1} parent=1 // pred_check
      _
    $region7: #{tag_intent_classifier.1} parent=1 // pred_check_branch
      %22 = sbr.rel (0) target = $region9
    $region8: #{tag_intent_classifier.1} parent=1 // pred_region
      %s24 = ssub.s32 256, 256
      %25 = vsyncadd [#allocation6], %s24
      %s26 = sshll.u32 [#allocation5], 4
      %s27 = int_to_ptr.vmem [resolvable:$true] %s26
      %32 = dma.hbm_to_vmem [thread:$0]  %s1, 256, %s27, [#allocation6], 64, 64, 4
    $region9: #{tag_intent_classifier.1} parent=1 // pred_fallthru
      _
    // Predicated region
    $region10: #{tag_intent_classifier.1} parent=1 // pred_check
      _
    $region11: #{tag_intent_classifier.1} parent=1 // pred_check_branch
      %34 = sbr.rel (0) target = $region13
    $region12: #{tag_intent_classifier.1} parent=1 // pred_region
      _
    $region13: #{tag_intent_classifier.1} parent=1 // pred_fallthru
      _
    // Predicated region
    $region14: #{tag_intent_classifier.1} parent=1 // pred_check
      _
    $region15: #{tag_intent_classifier.1} parent=1 // pred_check_branch
      %36 = sbr.rel (0) target = $region17
    $region16: #{tag_intent_classifier.1} parent=1 // pred_region
      %37 = dma.done [#allocation3], 128
    $region17: #{tag_intent_classifier.1} parent=1 // pred_fallthru
      _
    // Predicated region
    $region18: #{tag_intent_classifier.1} parent=1 // pred_check
      _
    $region19: #{tag_intent_classifier.1} parent=1 // pred_check_branch
      %39 = sbr.rel (0) target = $region21
    $region20: #{tag_intent_classifier.1} parent=1 // pred_region
      %40 = dma.done [#allocation6], 256
    $region21: #{tag_intent_classifier.1} parent=1 // pred_fallthru
      _
    %v41 = vld [vmem:[#allocation2] sm:$0xff]
    %v42 = vld [vmem:[#allocation5] sm:$0xf]
    %v43 = vld [vmem:[#allocation5 + $0x4] sm:$0xf]
    %v44 = vld [vmem:[#allocation5 + $0x8] sm:$0xf]
    %v45 = vld [vmem:[#allocation5 + $0xc] sm:$0xf]
    %v46 = vunpack.c.l.bf16 %v42
    %v47 = vunpack.c.l.bf16 %v43
    %v48 = vunpack.c.l.bf16 %v44
    %v49 = vunpack.c.l.bf16 %v45
    %v50 = vld [vmem:[%s2] sm:$0x1]
    %v52 = vlaneseq
    %v53 = vshrl.u32 %v52, 7
    %v54 = vsub.s32 0, %v53
    %v55 = vrot.slane %v50, %v54
    %vm57 = vcmask 261120
    %v59 = vsel %vm57, %v41, 0
    %61 = vmatprep.subr.mxu0 0.0
    %62 = vmatpush1.msra.mxu0 %v46
    %63 = vmatprep.subr.mxu0 0.0
    %64 = vmatpush1.msra.mxu0 %v47
    %65 = vmatprep.subr.mxu0 0.0
    %66 = vmatpush1.msra.mxu0 %v48
    %67 = vmatprep.subr.mxu0 0.0
    %68 = vmatpush1.msra.mxu0 %v49
    %69 = vmatprep.subr.mxu0 0.0
    %70 = vmatpush1.msra.mxu0 0.0
    %71 = vmatprep.subr.mxu0 0.0
    %72 = vmatpush1.msra.mxu0 0.0
    %73 = vmatprep.subr.mxu0 0.0
    %74 = vmatpush1.msra.mxu0 0.0
    %75 = vmatprep.subr.mxu0 0.0
    %76 = vmatpush1.msra.mxu0 0.0
    %77 = vmatprep.subr.mxu0 0.0
    %78 = vmatpush1.msra.mxu0 0.0
    %79 = vmatprep.subr.mxu0 0.0
    %80 = vmatpush1.msra.mxu0 0.0
    %81 = vmatprep.subr.mxu0 0.0
    %82 = vmatpush1.msra.mxu0 0.0
    %83 = vmatprep.subr.mxu0 0.0
    %84 = vmatpush1.msra.mxu0 0.0
    %85 = vmatprep.subr.mxu0 0.0
    %86 = vmatpush1.msra.mxu0 0.0
    %87 = vmatprep.subr.mxu0 0.0
    %88 = vmatpush1.msra.mxu0 0.0
    %89 = vmatprep.subr.mxu0 0.0
    %90 = vmatpush1.msra.mxu0 0.0
    %91 = vmatprep.subr.mxu0 0.0
    %92 = vmatpush1.msra.mxu0 0.0
    %93 = vmatprep.subr.mxu0 0.0
    %94 = vmatpush1.msra.mxu0 0.0
    %95 = vmatprep.subr.mxu0 0.0
    %96 = vmatpush1.msra.mxu0 0.0
    %97 = vmatprep.subr.mxu0 0.0
    %98 = vmatpush1.msra.mxu0 0.0
    %99 = vmatprep.subr.mxu0 0.0
    %100 = vmatpush1.msra.mxu0 0.0
    %101 = vmatprep.subr.mxu0 0.0
    %102 = vmatpush1.msra.mxu0 0.0
    %103 = vmatprep.subr.mxu0 0.0
    %104 = vmatpush1.msra.mxu0 0.0
    %105 = vmatprep.subr.mxu0 0.0
    %106 = vmatpush1.msra.mxu0 0.0
    %107 = vmatprep.subr.mxu0 0.0
    %108 = vmatpush1.msra.mxu0 0.0
    %109 = vmatprep.subr.mxu0 0.0
    %110 = vmatpush1.msra.mxu0 0.0
    %111 = vmatprep.subr.mxu0 0.0
    %112 = vmatpush1.msra.mxu0 0.0
    %113 = vmatprep.subr.mxu0 0.0
    %114 = vmatpush1.msra.mxu0 0.0
    %115 = vmatprep.subr.mxu0 0.0
    %116 = vmatpush1.msra.mxu0 0.0
    %117 = vmatprep.subr.mxu0 0.0
    %118 = vmatpush1.msra.mxu0 0.0
    %119 = vmatprep.subr.mxu0 0.0
    %120 = vmatpush1.msra.mxu0 0.0
    %121 = vmatprep.subr.mxu0 0.0
    %122 = vmatpush1.msra.mxu0 0.0
    %123 = vmatprep.subr.mxu0 0.0
    %124 = vmatpush1.msra.mxu0 0.0
    %125 = vmatprep.mubr.f32.mxu0 0.0
    %126 = vmatmul.mubr.f32.gmra.mrb[0].mxu0 %v59
    %v127 = vpop.f32.mrb[0].mxu0
    %v128 = vadd.f32 %v55, %v127
    %v129 = vpop.f32.mrb[0].mxu0
    %130 = vdwg.mxu0
    %131 = vmax.xlane.f32.xlu0 %v128
    %v132 = vpop.xlane.xlu0 %131
    %v133 = vsub.f32 %v128, %v132
    %v134 = vmul.f32 %v133, 1.442695
    %v135 = vpow.pop %v134
    %136 = vadd.xlane.f32.xlu0 %v135
    %v137 = vpop.xlane.xlu0 %136
    %v138 = vrcp.pop %v137
    %v139 = vmul.f32 %v135, %v138
    %vm140 = vcmask 130048
    %141 = vst.msk [vmem:[#allocation7] sm:$0xff] %vm140, %v139
    // Predicated region
    $region22: #{tag_intent_classifier.1} parent=1 // pred_check
      _
    $region23: #{tag_intent_classifier.1} parent=1 // pred_check_branch
      %143 = sbr.rel (0) target = $region25
    $region24: #{tag_intent_classifier.1} parent=1 // pred_region
      %s145 = ssub.s32 128, 128
      %146 = vsyncadd [#allocation4], %s145
      %s148 = sshll.u32 [#allocation7], 4
      %s149 = int_to_ptr.vmem [resolvable:$true] %s148
      %151 = dma.vmem_to_hbm [thread:$0]  %s149, 128, %s3, [#allocation4]
    $region25: #{tag_intent_classifier.1} parent=1 // pred_fallthru
      _
    // Predicated region
    $region26: #{tag_intent_classifier.1} parent=1 // pred_check
      _
    $region27: #{tag_intent_classifier.1} parent=1 // pred_check_branch
      %153 = sbr.rel (0) target = $region29
    $region28: #{tag_intent_classifier.1} parent=1 // pred_region
      %154 = dma.done [#allocation4], 128
    $region29: #{tag_intent_classifier.1} parent=1 // pred_fallthru
      _
    %155 = vsyncpa [#allocation3], 1
    %156 = vsyncpa [#allocation6], 1
    %157 = vsyncpa [#allocation4], 1

</llo_original>
